<compile_context>
chip_gen: v5e
topology: v5e:2x2
jax: 0.10.0
libtpu: 0.0.40
codegen_flags: <defaults>
</compile_context>

<pallas_src>
import functools

import jax
import jax.numpy as jnp
from jax.experimental import pallas as pl
from jax.experimental.pallas import tpu as pltpu


# --------------------------------------------------------------------------
# Kernel
# --------------------------------------------------------------------------
def _attn_gate_kernel(g_ref, x_ref, wg_ref, wx_ref, b_ref, wpsi_ref, bpsi_ref,
                      out_ref, *, f_g, f_l, b_blk):
    # g_ref:  (b_blk*F_g, tp)   x_ref: (b_blk*F_l, tp)   (channels x pixels)
    # wg_ref: (F_int, F_g)   wx_ref: (F_int, F_l)
    # b_ref:  (F_int, 1)  fused (bn_g + bn_x) bias
    # wpsi_ref: (F_int, 1) folded psi weight column
    # bpsi_ref: (1,) scalar in SMEM
    wg = wg_ref[...]
    wx = wx_ref[...]
    bias = b_ref[...]
    wpsi = wpsi_ref[...]
    bpsi = bpsi_ref[0]

    # Static unroll over the images packed into this block (b_blk is small).
    for bi in range(b_blk):
        g = g_ref[pl.ds(bi * f_g, f_g), :]
        x = x_ref[pl.ds(bi * f_l, f_l), :]

        # Fused g/x 1x1-conv projections: two MXU dots into one f32
        # accumulator, single fused bias.
        s = jnp.dot(wg, g, preferred_element_type=jnp.float32)
        s = s + jnp.dot(wx, x, preferred_element_type=jnp.float32)
        p = jnp.maximum(s + bias, 0.0)                       # ReLU, (F_int, tp)

        # psi projection (F_int -> 1) as VPU multiply + sublane reduce;
        # sigmoid goes to the EUP.
        z = jnp.sum(p * wpsi, axis=0, keepdims=True) + bpsi
        psi = jax.nn.sigmoid(z)                              # (1, tp)

        # Gate x; (1, tp) broadcasts over the channel sublanes.
        out_ref[pl.ds(bi * f_l, f_l), :] = (
            x.astype(jnp.float32) * psi).astype(out_ref.dtype)


# --------------------------------------------------------------------------
# Wrapper helpers
# --------------------------------------------------------------------------
def _round_up(v, m):
    return -(-v // m) * m


def _fold_bn(w, gamma, beta, mean, var, eps):
    """Fold inference-mode BatchNorm into a 1x1 conv.

    w: (C_out, C_in) conv weight (PyTorch layout, squeezed).
    Returns (w_folded, bias) with bias shape (C_out, 1): y = w_folded @ x + bias.
    """
    s = gamma / jnp.sqrt(var + eps)             # (C_out,)
    return w * s[:, None], (beta - mean * s)[:, None]


def _vmem_capacity_bytes():
    """Trace-time VMEM capacity query; conservative (v7x) fallback."""
    try:
        info = pltpu.get_tpu_info()
        for name in ("vmem_capacity_bytes", "vmem_size_bytes", "vmem_bytes"):
            cap = getattr(info, name, None)
            if cap:
                return int(cap)
    except Exception:
        pass
    return 64 << 20


def _pick_tiles(hw, n_batch, f_g, f_l, f_int, itemsize, budget, two_core,
                target):
    """Pick (pixel_tile, batch_block, padded_hw, footprint).

    Prefers tiles that divide hw exactly (no HBM pad/slice round trip); only
    falls back to padding when hw has no fitting 128-multiple divisor.
    """
    def footprint(tile, b_blk=1):
        io = 2 * b_blk * (f_g + 2 * f_l) * tile * itemsize   # dbl-buffered g/x/out
        inter = 2 * f_int * tile * 4                         # f32 intermediates
        return io + inter

    thw, b_blk, pad = None, 1, False

    if hw <= max(target, 128) and footprint(hw, 1) <= budget:
        # Whole image fits in one lane tile: no pad; amortize per-step
        # overhead by packing several batch images per grid step when cheap.
        thw = hw
        per_img_io = (f_g + 2 * f_l) * hw * itemsize
        for cand in range(2, min(n_batch, 16) + 1):
            if n_batch % cand:
                continue
            if footprint(hw, cand) > budget or cand * per_img_io > (16 << 20):
                break
            b_blk = cand
    else:
        # Largest 128-multiple divisor of hw that fits the VMEM budget.
        t = (min(hw, target) // 128) * 128
        while t >= 128:
            if hw % t == 0 and footprint(t) <= budget:
                thw = t
                break
            t -= 128
        if thw is None:
            # Rare fallback: pad the pixel axis.
            t = (min(_round_up(hw, 128), target) // 128) * 128
            while t > 128 and footprint(t) > budget:
                t -= 128
            thw, pad = t, True

    hw_pad = _round_up(hw, thw) if pad else hw

    # On v7x (2 TensorCores) make sure both cores get at least one step.
    if two_core:
        steps = (n_batch // b_blk) * (hw_pad // thw)
        if steps < 2:
            if b_blk > 1:
                while b_blk > 1 and n_batch // b_blk < 2:
                    b_blk -= 1
                    while n_batch % b_blk:
                        b_blk -= 1
            elif not pad and thw % 256 == 0:
                thw //= 2

    return thw, b_blk, hw_pad, footprint(thw, b_blk)


# --------------------------------------------------------------------------
# Public entry point
# --------------------------------------------------------------------------
@functools.partial(jax.jit, static_argnames=("tile_target", "eps"))
def attention_gate(g, x, params, *, tile_target=16384, eps=1e-5):
    """g, x: NCHW float32.  Returns x * psi (NCHW), eval-mode BN."""
    N, F_g, Hg, Wg_sp = g.shape
    Nx, F_l, H, W = x.shape
    F_int = params["wg"].shape[0]
    assert N == Nx
    assert F_g % 8 == 0 and F_l % 8 == 0, (
        "channels-on-sublanes layout requires F_g, F_l to be multiples of 8")

    if (Hg, Wg_sp) != (H, W):
        # 1x1 conv + BN commute with per-channel bilinear resampling, so
        # resizing g here matches F.interpolate(g1, mode='bilinear',
        # align_corners=False); antialias=False matches PyTorch exactly.
        g = jax.image.resize(g, (N, F_g, H, W), method="bilinear",
                             antialias=False)

    hw = H * W
    itemsize = jnp.dtype(x.dtype).itemsize

    # Generation-aware VMEM sizing: v5e/v6e have 128 MiB per core, v7x 64 MiB.
    vmem_cap = _vmem_capacity_bytes()
    if vmem_cap >= (128 << 20):                     # v5e / v6e
        budget, limit_cap, two_core = 96 << 20, 100 << 20, False
    else:                                           # v7x
        budget, limit_cap, two_core = 40 << 20, 52 << 20, True

    thw, b_blk, hw_pad, footprint = _pick_tiles(
        hw, N, F_g, F_l, F_int, itemsize, budget, two_core, tile_target)

    # NCHW -> (N*C, H*W): pure reshape, no transpose / HBM round-trip.
    g2 = g.reshape(N * F_g, hw)
    x2 = x.reshape(N * F_l, hw)
    if hw_pad != hw:
        # TODO(synk): ragged pixel tails fall back to an HBM pad/slice round
        # trip; only hit when H*W has no 128-multiple divisor <= tile_target.
        g2 = jnp.pad(g2, ((0, 0), (0, hw_pad - hw)))
        x2 = jnp.pad(x2, ((0, 0), (0, hw_pad - hw)))

    # Fold BN into the 1x1-conv weights; fuse the g/x biases into one vector.
    wg_f, bg = _fold_bn(params["wg"], params["bn_g_gamma"], params["bn_g_beta"],
                        params["bn_g_mean"], params["bn_g_var"], eps)
    wx_f, bx = _fold_bn(params["wx"], params["bn_x_gamma"], params["bn_x_beta"],
                        params["bn_x_mean"], params["bn_x_var"], eps)
    wpsi_f, bpsi = _fold_bn(params["wpsi"], params["bn_p_gamma"],
                            params["bn_p_beta"], params["bn_p_mean"],
                            params["bn_p_var"], eps)
    b_f = bg + bx                               # (F_int, 1)
    wpsi_col = wpsi_f.reshape(F_int, 1)         # (F_int, 1)
    bpsi_s = bpsi.reshape(1)                    # scalar -> SMEM

    grid = (N // b_blk, hw_pad // thw)

    m_real = N * hw
    cost = pl.CostEstimate(
        flops=int(2 * m_real * (F_g + F_l) * F_int
                  + 4 * m_real * F_int + 3 * m_real * F_l),
        transcendentals=int(m_real),
        bytes_accessed=int(itemsize * m_real * (F_g + 2 * F_l)
                           + 4 * F_int * (F_g + F_l + 2) + 4),
    )
    vmem_limit = int(min(limit_cap, max(16 << 20, footprint + (4 << 20))))

    kernel = functools.partial(_attn_gate_kernel, f_g=F_g, f_l=F_l,
                               b_blk=b_blk)

    out2 = pl.pallas_call(
        kernel,
        out_shape=jax.ShapeDtypeStruct((N * F_l, hw_pad), x.dtype),
        grid_spec=pltpu.PrefetchScalarGridSpec(
            num_scalar_prefetch=0,
            grid=grid,
            in_specs=[
                pl.BlockSpec((b_blk * F_g, thw), lambda n, j: (n, j)),   # g
                pl.BlockSpec((b_blk * F_l, thw), lambda n, j: (n, j)),   # x
                pl.BlockSpec((F_int, F_g), lambda n, j: (0, 0)),         # W_g
                pl.BlockSpec((F_int, F_l), lambda n, j: (0, 0)),         # W_x
                pl.BlockSpec((F_int, 1), lambda n, j: (0, 0)),           # bias
                pl.BlockSpec((F_int, 1), lambda n, j: (0, 0)),           # W_psi
                pl.BlockSpec(memory_space=pltpu.MemorySpace.SMEM),       # b_psi
            ],
            out_specs=pl.BlockSpec((b_blk * F_l, thw), lambda n, j: (n, j)),
        ),
        compiler_params=pltpu.CompilerParams(
            dimension_semantics=("parallel", "parallel"),
            vmem_limit_bytes=vmem_limit),
        cost_estimate=cost,
    )(g2, x2, wg_f, wx_f, b_f, wpsi_col, bpsi_s)

    if hw_pad != hw:
        out2 = out2[:, :hw]
    return out2.reshape(N, F_l, H, W)


# --------------------------------------------------------------------------
# Plain-JAX reference (PyTorch forward, eval-mode BN)
# --------------------------------------------------------------------------
def _reference(g, x, params, eps=1e-5):
    def conv_bn(inp, w, gamma, beta, mean, var):
        y = jnp.einsum("nchw,oc->nohw", inp, w)      # 1x1 conv, w: (C_out, C_in)
        s = gamma / jnp.sqrt(var + eps)
        return y * s[None, :, None, None] + (beta - mean * s)[None, :, None, None]

    g1 = conv_bn(g, params["wg"], params["bn_g_gamma"], params["bn_g_beta"],
                 params["bn_g_mean"], params["bn_g_var"])
    x1 = conv_bn(x, params["wx"], params["bn_x_gamma"], params["bn_x_beta"],
                 params["bn_x_mean"], params["bn_x_var"])
    if g1.shape[2:] != x1.shape[2:]:
        g1 = jax.image.resize(g1, x1.shape, method="bilinear", antialias=False)
    p = jnp.maximum(g1 + x1, 0.0)
    psi = conv_bn(p, params["wpsi"], params["bn_p_gamma"], params["bn_p_beta"],
                  params["bn_p_mean"], params["bn_p_var"])
    psi = jax.nn.sigmoid(psi)
    return x * psi


def _init_params(key, F_g, F_l, F_int):
    ks = jax.random.split(key, 9)
    return {
        # conv weights in PyTorch (C_out, C_in) layout (kernel does W @ x)
        "wg": jax.random.normal(ks[0], (F_int, F_g), jnp.float32) * 0.1,
        "wx": jax.random.normal(ks[1], (F_int, F_l), jnp.float32) * 0.1,
        "wpsi": jax.random.normal(ks[2], (1, F_int), jnp.float32) * 0.1,
        # BatchNorm params (deterministic, non-trivial)
        "bn_g_gamma": 1.0 + 0.1 * jax.random.normal(ks[3], (F_int,), jnp.float32),
        "bn_g_beta": 0.05 * jax.random.normal(ks[4], (F_int,), jnp.float32),
        "bn_g_mean": 0.02 * jnp.arange(F_int, dtype=jnp.float32),
        "bn_g_var": jnp.ones((F_int,), jnp.float32) * 0.9,
        "bn_x_gamma": 1.0 + 0.1 * jax.random.normal(ks[5], (F_int,), jnp.float32),
        "bn_x_beta": 0.05 * jax.random.normal(ks[6], (F_int,), jnp.float32),
        "bn_x_mean": -0.01 * jnp.arange(F_int, dtype=jnp.float32),
        "bn_x_var": jnp.ones((F_int,), jnp.float32) * 1.1,
        "bn_p_gamma": jnp.array([1.2], jnp.float32),
        "bn_p_beta": jnp.array([-0.1], jnp.float32),
        "bn_p_mean": jnp.array([0.03], jnp.float32),
        "bn_p_var": jnp.array([0.95], jnp.float32),
    }


if __name__ == "__main__":
    key = jax.random.PRNGKey(0)
    kg, kx, kp, kg2 = jax.random.split(key, 4)

    # Small AttUNet-like gate: att1 scaled down (channels multiples of 8).
    N, F_g, F_l, F_int, H, W = 2, 64, 64, 32, 16, 16
    g = jax.random.normal(kg, (N, F_g, H, W), jnp.float32)
    x = jax.random.normal(kx, (N, F_l, H, W), jnp.float32)
    params = _init_params(kp, F_g, F_l, F_int)

    # Same-spatial path.
    out = attention_gate(g, x, params)
    out = jax.block_until_ready(out)
    ref = _reference(g, x, params)
    assert out.shape == (N, F_l, H, W)
    assert jnp.allclose(out, ref, atol=1e-4, rtol=1e-4), "mismatch vs reference"

    # Bilinear-resize path (g spatially smaller than x, like up4/x4 mismatch).
    g_small = jax.random.normal(kg2, (N, F_g, H // 2, W // 2), jnp.float32)
    out2 = attention_gate(g_small, x, params)
    out2 = jax.block_until_ready(out2)
    ref2 = _reference(g_small, x, params)
    assert out2.shape == (N, F_l, H, W)
    assert jnp.allclose(out2, ref2, atol=1e-4, rtol=1e-4), "mismatch (resize path)"

    print("KERNEL_OK")
</pallas_src>

<mosaic_0001>
module attributes {stable_mosaic.version = 11 : i64} {
  func.func @_attn_gate_kernel(%arg0: i32, %arg1: i32, %arg2: memref<64x256xf32, #tpu.memory_space<vmem>>, %arg3: memref<64x256xf32, #tpu.memory_space<vmem>>, %arg4: memref<32x64xf32, #tpu.memory_space<vmem>>, %arg5: memref<32x64xf32, #tpu.memory_space<vmem>>, %arg6: memref<32x1xf32, #tpu.memory_space<vmem>>, %arg7: memref<32x1xf32, #tpu.memory_space<vmem>>, %arg8: memref<1xf32, #tpu.memory_space<smem>>, %arg9: memref<64x256xf32, #tpu.memory_space<vmem>>) attributes {dimension_semantics = [#tpu.dimension_semantics<parallel>, #tpu.dimension_semantics<parallel>], iteration_bounds = array<i64: 2, 1>, scalar_prefetch = 0 : i64, scratch_operands = 0 : i64, tpu.core_type = #tpu.core_type<tc>, window_params = [{transform_indices = @transform_0, window_bounds = array<i64: 64, 256>}, {transform_indices = @transform_1, window_bounds = array<i64: 64, 256>}, {pipeline_mode = #tpu.pipeline_mode<synchronous>, transform_indices = @transform_2, window_bounds = array<i64: 32, 64>}, {pipeline_mode = #tpu.pipeline_mode<synchronous>, transform_indices = @transform_3, window_bounds = array<i64: 32, 64>}, {pipeline_mode = #tpu.pipeline_mode<synchronous>, transform_indices = @transform_4, window_bounds = array<i64: 32, 1>}, {pipeline_mode = #tpu.pipeline_mode<synchronous>, transform_indices = @transform_5, window_bounds = array<i64: 32, 1>}, {transform_indices = @transform_6, window_bounds = array<i64: 1>}, {transform_indices = @transform_7, window_bounds = array<i64: 64, 256>}]} {
    %c0 = arith.constant 0 : index
    %c0_0 = arith.constant 0 : index
    %0 = vector.load %arg4[%c0, %c0_0] : memref<32x64xf32, #tpu.memory_space<vmem>>, vector<32x64xf32>
    %c0_1 = arith.constant 0 : index
    %c0_2 = arith.constant 0 : index
    %1 = vector.load %arg5[%c0_1, %c0_2] : memref<32x64xf32, #tpu.memory_space<vmem>>, vector<32x64xf32>
    %c0_3 = arith.constant 0 : index
    %c0_4 = arith.constant 0 : index
    %2 = vector.load %arg6[%c0_3, %c0_4] : memref<32x1xf32, #tpu.memory_space<vmem>>, vector<32x1xf32>
    %c0_5 = arith.constant 0 : index
    %c0_6 = arith.constant 0 : index
    %3 = vector.load %arg7[%c0_5, %c0_6] : memref<32x1xf32, #tpu.memory_space<vmem>>, vector<32x1xf32>
    %c0_7 = arith.constant 0 : index
    %4 = memref.load %arg8[%c0_7] : memref<1xf32, #tpu.memory_space<smem>>
    %c0_8 = arith.constant 0 : index
    %c0_9 = arith.constant 0 : index
    %5 = vector.load %arg2[%c0_8, %c0_9] : memref<64x256xf32, #tpu.memory_space<vmem>>, vector<64x256xf32>
    %c0_10 = arith.constant 0 : index
    %c0_11 = arith.constant 0 : index
    %6 = vector.load %arg3[%c0_10, %c0_11] : memref<64x256xf32, #tpu.memory_space<vmem>>, vector<64x256xf32>
    %cst = arith.constant dense<0.000000e+00> : vector<32x256xf32>
    %7 = tpu.matmul %0, %5, %cst {dimension_numbers = #tpu.dot_dimension_numbers<[1], [0], [0], [1], [0, 0, 1, 1], [], []>} : vector<32x64xf32>, vector<64x256xf32>, vector<32x256xf32> -> vector<32x256xf32>
    %cst_12 = arith.constant dense<0.000000e+00> : vector<32x256xf32>
    %8 = tpu.matmul %1, %6, %cst_12 {dimension_numbers = #tpu.dot_dimension_numbers<[1], [0], [0], [1], [0, 0, 1, 1], [], []>} : vector<32x64xf32>, vector<64x256xf32>, vector<32x256xf32> -> vector<32x256xf32>
    %9 = arith.addf %7, %8 : vector<32x256xf32>
    %10 = vector.broadcast %2 : vector<32x1xf32> to vector<32x256xf32>
    %11 = arith.addf %9, %10 : vector<32x256xf32>
    %cst_13 = arith.constant 0.000000e+00 : f32
    %12 = vector.broadcast %cst_13 : f32 to vector<32x256xf32>
    %13 = arith.maximumf %11, %12 : vector<32x256xf32>
    %14 = vector.broadcast %3 : vector<32x1xf32> to vector<32x256xf32>
    %15 = arith.mulf %13, %14 : vector<32x256xf32>
    %cst_14 = arith.constant dense<0.000000e+00> : vector<256xf32>
    %16 = vector.multi_reduction <add>, %15, %cst_14 [0] : vector<32x256xf32> to vector<256xf32>
    %17 = vector.shape_cast %16 : vector<256xf32> to vector<1x256xf32>
    %18 = vector.broadcast %4 : f32 to vector<1x256xf32>
    %19 = arith.addf %17, %18 : vector<1x256xf32>
    %20 = arith.negf %19 : vector<1x256xf32>
    %21 = math.exp %20 : vector<1x256xf32>
    %cst_15 = arith.constant 1.000000e+00 : f32
    %22 = vector.broadcast %cst_15 : f32 to vector<1x256xf32>
    %23 = arith.addf %22, %21 : vector<1x256xf32>
    %24 = arith.divf %22, %23 : vector<1x256xf32>
    %25 = vector.broadcast %24 : vector<1x256xf32> to vector<64x256xf32>
    %26 = arith.mulf %6, %25 : vector<64x256xf32>
    %c0_16 = arith.constant 0 : index
    %c0_17 = arith.constant 0 : index
    %27 = vector.load %arg9[%c0_16, %c0_17] : memref<64x256xf32, #tpu.memory_space<vmem>>, vector<64x256xf32>
    tpu.vector_store %arg9[%c0_16, %c0_17], %26 {strides = array<i32>} : memref<64x256xf32, #tpu.memory_space<vmem>>, vector<64x256xf32>,
    return
  }
  func.func @transform_0(%arg0: i32, %arg1: i32) -> (i32, i32) {
    %c0_i32 = arith.constant 0 : i32
    return %arg0, %arg1 : i32, i32
  }
  func.func @transform_1(%arg0: i32, %arg1: i32) -> (i32, i32) {
    %c0_i32 = arith.constant 0 : i32
    return %arg0, %arg1 : i32, i32
  }
  func.func @transform_2(%arg0: i32, %arg1: i32) -> (i32, i32) {
    %c0_i32 = arith.constant 0 : i32
    %c0_i32_0 = arith.constant 0 : i32
    %c0_i32_1 = arith.constant 0 : i32
    return %c0_i32, %c0_i32_0 : i32, i32
  }
  func.func @transform_3(%arg0: i32, %arg1: i32) -> (i32, i32) {
    %c0_i32 = arith.constant 0 : i32
    %c0_i32_0 = arith.constant 0 : i32
    %c0_i32_1 = arith.constant 0 : i32
    return %c0_i32, %c0_i32_0 : i32, i32
  }
  func.func @transform_4(%arg0: i32, %arg1: i32) -> (i32, i32) {
    %c0_i32 = arith.constant 0 : i32
    %c0_i32_0 = arith.constant 0 : i32
    %c0_i32_1 = arith.constant 0 : i32
    return %c0_i32, %c0_i32_0 : i32, i32
  }
  func.func @transform_5(%arg0: i32, %arg1: i32) -> (i32, i32) {
    %c0_i32 = arith.constant 0 : i32
    %c0_i32_0 = arith.constant 0 : i32
    %c0_i32_1 = arith.constant 0 : i32
    return %c0_i32, %c0_i32_0 : i32, i32
  }
  func.func @transform_6(%arg0: i32, %arg1: i32) -> i32 {
    %c0_i32 = arith.constant 0 : i32
    %c0_i32_0 = arith.constant 0 : i32
    return %c0_i32 : i32
  }
  func.func @transform_7(%arg0: i32, %arg1: i32) -> (i32, i32) {
    %c0_i32 = arith.constant 0 : i32
    return %arg0, %arg1 : i32, i32
  }
}

</mosaic_0001>

<llo_original>
// kernel: attention_gate.1
$region0: #{attention_gate.1}
  #allocation0 [shape = 'u32[]', space=smem, size = 0x4, offset = 0x4, fixed_abs, tag = 'smem constant byte address 0x4 - core index']
  #allocation1 [shape = 'u32[72,128]{1,0:T(1,128)}', space=vmem, size = 0x9000, scoped, tag = 'internal scratch']
  #allocation2 [shape = 'f32[1]{0:T(128)S(6)}', space=smem, size = 0x200, scoped, tag = 'scoped memory for attention_gate.1']
  %s0 = inlined_call_operand.vmem [shape: f32[128,256], index: 0, kind: input, shape index: {}]
  %s1 = inlined_call_operand.vmem [shape: f32[128,256], index: 1, kind: input, shape index: {}]
  %s2 = inlined_call_operand.vmem [shape: f32[32,64], index: 2, kind: input, shape index: {}]
  %s3 = inlined_call_operand.vmem [shape: f32[32,64], index: 3, kind: input, shape index: {}]
  %s4 = inlined_call_operand.vmem [shape: f32[32,1], index: 4, kind: input, shape index: {}]
  %s5 = inlined_call_operand.vmem [shape: f32[32,1], index: 5, kind: input, shape index: {}]
  %s6 = inlined_call_operand.<no memory space> [shape: f32[1], index: 6, kind: input, shape index: {}]
  %s7 = inlined_call_operand.vmem [shape: f32[128,256], index: 7, kind: output, shape index: {}]
  %s8 = sld [smem:[#allocation0]]
  $region61: #{attention_gate.1} parent=0
    _
  %s10 = ssub.s32 1, %s8
  %s11 = scalar_select 0, %s10, %s8
  %12 = sst [smem:[#allocation2]] %s6
  loop: start=0, step=1, limit=4
  $region2: #{attention_gate.1} parent=0 // loop_pre_header
    _
  $region3: #{attention_gate.1} parent=0 // loop_header
    %s14 = sphi 0, %s18
    %p15 = scmp.ge.s32.totalorder %s14, 4
    %s21 = sphi 0, %s33
    %s22 = sphi 0, %s29
    %s23 = sphi 0, %s21
    %s24 = sphi 0, %s22
    %s25 = sphi 0, %s23
    %s26 = sphi 0, %s24
    %s38 = sphi 0, %s40
    %s41 = sphi 0, %s38
    %s42 = sphi 0, %s41
    %s58 = sphi 0, %s42
    %s66 = sphi 0, %s68
    %s69 = sphi 0, %s66
    %s70 = sphi 0, %s69
    %s86 = sphi 0, %s70
    %s90 = sphi 0, %s90
    %s92 = sphi 0, %s90
    %s93 = sphi 0, %s92
    %s107 = sphi 0, %s93
    %s111 = sphi 0, %s111
    %s113 = sphi 0, %s111
    %s114 = sphi 0, %s113
    %s128 = sphi 0, %s114
    %s132 = sphi 0, %s132
    %s134 = sphi 0, %s132
    %s135 = sphi 0, %s134
    %s149 = sphi 0, %s135
    %s153 = sphi 0, %s153
    %s155 = sphi 0, %s153
    %s156 = sphi 0, %s155
    %s170 = sphi 0, %s156
    %s174 = sphi 0, %s174
    %s176 = sphi 0, %s174
    %s177 = sphi 0, %s176
    %s191 = sphi 0, %s177
    %s199 = sphi 0, %s201
    %s202 = sphi 0, %s199
    %s203 = sphi 0, %s202
    %s219 = sphi 0, %s203
  $region4: #{attention_gate.1} parent=0 // loop_header_branch
    %17 = sbr.rel (%p15) target = $region8
  $region5: #{attention_gate.1} parent=0 // loop_body
    %s19 = ssub.s32 %s14, 1
    %s20 = ssub.s32 %s14, 2
    %s27 = sadd.s32 1, %s22
    %p28 = scmp.ge.s32.totalorder %s27, 1
    %s29 = scalar_select %p28, 0, %s27
    %s30 = sadd.s32 1, %s21
    %s31 = scalar_select %p28, %s30, %s21
    %p32 = scmp.ge.s32.totalorder %s31, 2
    %s33 = scalar_select %p32, 0, %s31
    %s34 = ssub.s32 %s21, %s33
    %s35 = ssub.s32 %s22, %s29
    %s36 = sor.u32 %s34, %s35
    %p37 = scmp.eq.s32.totalorder %s36, 0
    %s39 = sadd.s32 %s38, 1
    %s40 = scalar_select %p37, %s38, %s39
    %p43 = pneg %p37
    %p44 = scmp.eq.s32.totalorder %s14, 1
    %p45 = por %p43, %p44
    %p46 = scmp.ne.s32.totalorder %s38, %s41
    %p47 = scmp.eq.s32.totalorder %s14, 0
    %p48 = por %p46, %p47
    %p49 = scmp.ne.s32.totalorder %s38, %s41
    %p50 = scmp.eq.s32.totalorder %s19, 1
    %p51 = por %p49, %p50
    %p52 = scmp.ne.s32.totalorder %s41, %s42
    %p53 = scmp.eq.s32.totalorder %s19, 0
    %p54 = por %p52, %p53
    %p55 = scmp.ne.s32.totalorder %s41, %s42
    %p56 = scmp.eq.s32.totalorder %s20, 1
    %p57 = por %p55, %p56
    %p59 = scmp.ne.s32.totalorder %s42, %s58
    %p60 = scmp.eq.s32.totalorder %s20, 0
    %p61 = por %p59, %p60
    %s62 = ssub.s32 %s21, %s33
    %s63 = ssub.s32 %s22, %s29
    %s64 = sor.u32 %s62, %s63
    %p65 = scmp.eq.s32.totalorder %s64, 0
    %s67 = sadd.s32 %s66, 1
    %s68 = scalar_select %p65, %s66, %s67
    %p71 = pneg %p65
    %p72 = scmp.eq.s32.totalorder %s14, 1
    %p73 = por %p71, %p72
    %p74 = scmp.ne.s32.totalorder %s66, %s69
    %p75 = scmp.eq.s32.totalorder %s14, 0
    %p76 = por %p74, %p75
    %p77 = scmp.ne.s32.totalorder %s66, %s69
    %p78 = scmp.eq.s32.totalorder %s19, 1
    %p79 = por %p77, %p78
    %p80 = scmp.ne.s32.totalorder %s69, %s70
    %p81 = scmp.eq.s32.totalorder %s19, 0
    %p82 = por %p80, %p81
    %p83 = scmp.ne.s32.totalorder %s69, %s70
    %p84 = scmp.eq.s32.totalorder %s20, 1
    %p85 = por %p83, %p84
    %p87 = scmp.ne.s32.totalorder %s70, %s86
    %p88 = scmp.eq.s32.totalorder %s20, 0
    %p89 = por %p87, %p88
    %s91 = sadd.s32 %s90, 1
    %p94 = scmp.eq.s32.totalorder %s14, 1
    %p95 = scmp.ne.s32.totalorder %s90, %s92
    %p96 = scmp.eq.s32.totalorder %s14, 0
    %p97 = por %p95, %p96
    %p98 = scmp.ne.s32.totalorder %s90, %s92
    %p99 = scmp.eq.s32.totalorder %s19, 1
    %p100 = por %p98, %p99
    %p101 = scmp.ne.s32.totalorder %s92, %s93
    %p102 = scmp.eq.s32.totalorder %s19, 0
    %p103 = por %p101, %p102
    %p104 = scmp.ne.s32.totalorder %s92, %s93
    %p105 = scmp.eq.s32.totalorder %s20, 1
    %p106 = por %p104, %p105
    %p108 = scmp.ne.s32.totalorder %s93, %s107
    %p109 = scmp.eq.s32.totalorder %s20, 0
    %p110 = por %p108, %p109
    %s112 = sadd.s32 %s111, 1
    %p115 = scmp.eq.s32.totalorder %s14, 1
    %p116 = scmp.ne.s32.totalorder %s111, %s113
    %p117 = scmp.eq.s32.totalorder %s14, 0
    %p118 = por %p116, %p117
    %p119 = scmp.ne.s32.totalorder %s111, %s113
    %p120 = scmp.eq.s32.totalorder %s19, 1
    %p121 = por %p119, %p120
    %p122 = scmp.ne.s32.totalorder %s113, %s114
    %p123 = scmp.eq.s32.totalorder %s19, 0
    %p124 = por %p122, %p123
    %p125 = scmp.ne.s32.totalorder %s113, %s114
    %p126 = scmp.eq.s32.totalorder %s20, 1
    %p127 = por %p125, %p126
    %p129 = scmp.ne.s32.totalorder %s114, %s128
    %p130 = scmp.eq.s32.totalorder %s20, 0
    %p131 = por %p129, %p130
    %s133 = sadd.s32 %s132, 1
    %p136 = scmp.eq.s32.totalorder %s14, 1
    %p137 = scmp.ne.s32.totalorder %s132, %s134
    %p138 = scmp.eq.s32.totalorder %s14, 0
    %p139 = por %p137, %p138
    %p140 = scmp.ne.s32.totalorder %s132, %s134
    %p141 = scmp.eq.s32.totalorder %s19, 1
    %p142 = por %p140, %p141
    %p143 = scmp.ne.s32.totalorder %s134, %s135
    %p144 = scmp.eq.s32.totalorder %s19, 0
    %p145 = por %p143, %p144
    %p146 = scmp.ne.s32.totalorder %s134, %s135
    %p147 = scmp.eq.s32.totalorder %s20, 1
    %p148 = por %p146, %p147
    %p150 = scmp.ne.s32.totalorder %s135, %s149
    %p151 = scmp.eq.s32.totalorder %s20, 0
    %p152 = por %p150, %p151
    %s154 = sadd.s32 %s153, 1
    %p157 = scmp.eq.s32.totalorder %s14, 1
    %p158 = scmp.ne.s32.totalorder %s153, %s155
    %p159 = scmp.eq.s32.totalorder %s14, 0
    %p160 = por %p158, %p159
    %p161 = scmp.ne.s32.totalorder %s153, %s155
    %p162 = scmp.eq.s32.totalorder %s19, 1
    %p163 = por %p161, %p162
    %p164 = scmp.ne.s32.totalorder %s155, %s156
    %p165 = scmp.eq.s32.totalorder %s19, 0
    %p166 = por %p164, %p165
    %p167 = scmp.ne.s32.totalorder %s155, %s156
    %p168 = scmp.eq.s32.totalorder %s20, 1
    %p169 = por %p167, %p168
    %p171 = scmp.ne.s32.totalorder %s156, %s170
    %p172 = scmp.eq.s32.totalorder %s20, 0
    %p173 = por %p171, %p172
    %s175 = sadd.s32 %s174, 1
    %p178 = scmp.eq.s32.totalorder %s14, 1
    %p179 = scmp.ne.s32.totalorder %s174, %s176
    %p180 = scmp.eq.s32.totalorder %s14, 0
    %p181 = por %p179, %p180
    %p182 = scmp.ne.s32.totalorder %s174, %s176
    %p183 = scmp.eq.s32.totalorder %s19, 1
    %p184 = por %p182, %p183
    %p185 = scmp.ne.s32.totalorder %s176, %s177
    %p186 = scmp.eq.s32.totalorder %s19, 0
    %p187 = por %p185, %p186
    %p188 = scmp.ne.s32.totalorder %s176, %s177
    %p189 = scmp.eq.s32.totalorder %s20, 1
    %p190 = por %p188, %p189
    %p192 = scmp.ne.s32.totalorder %s177, %s191
    %p193 = scmp.eq.s32.totalorder %s20, 0
    %p194 = por %p192, %p193
    %s195 = ssub.s32 %s21, %s33
    %s196 = ssub.s32 %s22, %s29
    %s197 = sor.u32 %s195, %s196
    %p198 = scmp.eq.s32.totalorder %s197, 0
    %s200 = sadd.s32 %s199, 1
    %s201 = scalar_select %p198, %s199, %s200
    %p204 = pneg %p198
    %p205 = scmp.eq.s32.totalorder %s14, 1
    %p206 = por %p204, %p205
    %p207 = scmp.ne.s32.totalorder %s199, %s202
    %p208 = scmp.eq.s32.totalorder %s14, 0
    %p209 = por %p207, %p208
    %p210 = scmp.ne.s32.totalorder %s199, %s202
    %p211 = scmp.eq.s32.totalorder %s19, 1
    %p212 = por %p210, %p211
    %p213 = scmp.ne.s32.totalorder %s202, %s203
    %p214 = scmp.eq.s32.totalorder %s19, 0
    %p215 = por %p213, %p214
    %p216 = scmp.ne.s32.totalorder %s202, %s203
    %p217 = scmp.eq.s32.totalorder %s20, 1
    %p218 = por %p216, %p217
    %p220 = scmp.ne.s32.totalorder %s203, %s219
    %p221 = scmp.eq.s32.totalorder %s20, 0
    %p222 = por %p220, %p221
    %p223 = scmp.le.s32.totalorder 1, %s14
    %p224 = scmp.lt.s32.totalorder %s14, 3
    %p225 = pnand %p223, %p224
    %p226 = pneg %p225
    // Predicated region
    $region9: #{attention_gate.1} parent=5 // pred_check
      _
    $region10: #{attention_gate.1} parent=5 // pred_check_branch
      %228 = sbr.rel (%p225) target = $region12
    $region11: #{attention_gate.1} parent=5 // pred_region
      %s229 = ssub.s32 %s14, 1
      // Predicated region
      $region13: #{attention_gate.1} parent=11 // pred_check
        %p230 = pneg %p103
      $region14: #{attention_gate.1} parent=11 // pred_check_branch
        %232 = sbr.rel (%p230) target = $region16
      $region15: #{attention_gate.1} parent=11 // pred_region
        _
      $region16: #{attention_gate.1} parent=11 // pred_fallthru
        _
      // Predicated region
      $region17: #{attention_gate.1} parent=11 // pred_check
        %p233 = pneg %p124
      $region18: #{attention_gate.1} parent=11 // pred_check_branch
        %235 = sbr.rel (%p233) target = $region20
      $region19: #{attention_gate.1} parent=11 // pred_region
        _
      $region20: #{attention_gate.1} parent=11 // pred_fallthru
        _
      // Predicated region
      $region21: #{attention_gate.1} parent=11 // pred_check
        %p236 = pneg %p145
      $region22: #{attention_gate.1} parent=11 // pred_check_branch
        %238 = sbr.rel (%p236) target = $region24
      $region23: #{attention_gate.1} parent=11 // pred_region
        _
      $region24: #{attention_gate.1} parent=11 // pred_fallthru
        _
      // Predicated region
      $region25: #{attention_gate.1} parent=11 // pred_check
        %p239 = pneg %p166
      $region26: #{attention_gate.1} parent=11 // pred_check_branch
        %241 = sbr.rel (%p239) target = $region28
      $region27: #{attention_gate.1} parent=11 // pred_region
        _
      $region28: #{attention_gate.1} parent=11 // pred_fallthru
        _
      // Predicated region
      $region29: #{attention_gate.1} parent=11 // pred_check
        %p242 = pneg %p187
      $region30: #{attention_gate.1} parent=11 // pred_check_branch
        %244 = sbr.rel (%p242) target = $region32
      $region31: #{attention_gate.1} parent=11 // pred_region
        _
      $region32: #{attention_gate.1} parent=11 // pred_fallthru
        _
    $region12: #{attention_gate.1} parent=5 // pred_fallthru
      _
    %p245 = scmp.lt.s32.totalorder %s14, 2
    // Predicated region
    $region33: #{attention_gate.1} parent=5 // pred_check
      %p246 = pneg %p245
    $region34: #{attention_gate.1} parent=5 // pred_check_branch
      %248 = sbr.rel (%p246) target = $region36
    $region35: #{attention_gate.1} parent=5 // pred_region
      // Predicated region
      $region37: #{attention_gate.1} parent=35 // pred_check
        %p249 = pneg %p48
      $region38: #{attention_gate.1} parent=35 // pred_check_branch
        %251 = sbr.rel (%p249) target = $region40
      $region39: #{attention_gate.1} parent=35 // pred_region
        %s252 = smul.u32 8, %s21
        %s253 = smul.u32 2, %s22
        %p254 = scmp.lt.s32.totalorder %s252, 15
        %s255 = scalar_select %p254, %s252, 15
        %p256 = scmp.lt.s32.totalorder %s253, 1
        %s257 = scalar_select %p256, %s253, 1
        %s258 = smul.addr %s255, 2
        %s259 = sadd.s32 %s257, %s258
        %s260 = smul.addr %s259, 8
        %s261 = scalar_lea.vmem %s0, %s260
        %s262 = smul.u32 8, %s21
        %s263 = smul.u32 2, %s22
      $region40: #{attention_gate.1} parent=35 // pred_fallthru
        _
      // Predicated region
      $region41: #{attention_gate.1} parent=35 // pred_check
        %p264 = pneg %p76
      $region42: #{attention_gate.1} parent=35 // pred_check_branch
        %266 = sbr.rel (%p264) target = $region44
      $region43: #{attention_gate.1} parent=35 // pred_region
        %s267 = smul.u32 8, %s21
        %s268 = smul.u32 2, %s22
        %p269 = scmp.lt.s32.totalorder %s267, 15
        %s270 = scalar_select %p269, %s267, 15
        %p271 = scmp.lt.s32.totalorder %s268, 1
        %s272 = scalar_select %p271, %s268, 1
        %s273 = smul.addr %s270, 2
        %s274 = sadd.s32 %s272, %s273
        %s275 = smul.addr %s274, 8
        %s276 = scalar_lea.vmem %s1, %s275
        %s277 = smul.u32 8, %s21
        %s278 = smul.u32 2, %s22
      $region44: #{attention_gate.1} parent=35 // pred_fallthru
        _
    $region36: #{attention_gate.1} parent=5 // pred_fallthru
      _
    %p279 = scmp.le.s32.totalorder 1, %s14
    %p280 = scmp.lt.s32.totalorder %s14, 3
    %p281 = pnand %p279, %p280
    %p282 = pneg %p281
    // Predicated region
    $region45: #{attention_gate.1} parent=5 // pred_check
      _
    $region46: #{attention_gate.1} parent=5 // pred_check_branch
      %284 = sbr.rel (%p281) target = $region48
    $region47: #{attention_gate.1} parent=5 // pred_region
      %s285 = ssub.s32 %s14, 1
      %s286 = smul.u32 8, %s23
      %s287 = smul.u32 2, %s24
      %p288 = scmp.lt.s32.totalorder %s286, 15
      %s289 = scalar_select %p288, %s286, 15
      %p290 = scmp.lt.s32.totalorder %s287, 1
      %s291 = scalar_select %p290, %s287, 1
      %s292 = smul.addr %s289, 2
      %s293 = sadd.s32 %s291, %s292
      %s294 = smul.addr %s293, 8
      %s295 = scalar_lea.vmem %s0, %s294
      %p296 = pneg %p54
      %p297 = pneg %p51
      %s298 = smul.u32 8, %s23
      %s299 = smul.u32 2, %s24
      %p300 = scmp.lt.s32.totalorder %s298, 15
      %s301 = scalar_select %p300, %s298, 15
      %p302 = scmp.lt.s32.totalorder %s299, 1
      %s303 = scalar_select %p302, %s299, 1
      %s304 = smul.addr %s301, 2
      %s305 = sadd.s32 %s303, %s304
      %s306 = smul.addr %s305, 8
      %s307 = scalar_lea.vmem %s1, %s306
      %p308 = pneg %p82
      %p309 = pneg %p79
      %p310 = pneg %p103
      %p311 = pneg %p100
      %p312 = pneg %p124
      %p313 = pneg %p121
      %p314 = pneg %p145
      %p315 = pneg %p142
      %p316 = pneg %p166
      %p317 = pneg %p163
      %p318 = pneg %p187
      %p319 = pneg %p184
      %p320 = pneg %p215
      %p321 = pneg %p212
      %s322 = smul.u32 8, %s23
      %s323 = smul.u32 2, %s24
      %p324 = scmp.lt.s32.totalorder %s322, 15
      %s325 = scalar_select %p324, %s322, 15
      %p326 = scmp.lt.s32.totalorder %s323, 1
      %s327 = scalar_select %p326, %s323, 1
      %s328 = smul.addr %s325, 2
      %s329 = sadd.s32 %s327, %s328
      %s330 = smul.addr %s329, 8
      %s331 = scalar_lea.vmem %s7, %s330
      %s332 = smul.u32 8, %s23
      %s333 = smul.u32 2, %s24
      %p334 = scmp.lt.s32.totalorder %s332, 15
      %s335 = scalar_select %p334, %s332, 15
      %p336 = scmp.lt.s32.totalorder %s333, 1
      %s337 = scalar_select %p336, %s333, 1
      %s338 = smul.addr %s335, 2
      %s339 = sadd.s32 %s337, %s338
      %s340 = smul.addr %s339, 8
      %s341 = scalar_lea.vmem %s0, %s340
      %s342 = smul.u32 8, %s23
      %s343 = smul.u32 2, %s24
      %s344 = smul.u32 8, %s23
      %s345 = smul.u32 2, %s24
      %p346 = scmp.lt.s32.totalorder %s344, 15
      %s347 = scalar_select %p346, %s344, 15
      %p348 = scmp.lt.s32.totalorder %s345, 1
      %s349 = scalar_select %p348, %s345, 1
      %s350 = smul.addr %s347, 2
      %s351 = sadd.s32 %s349, %s350
      %s352 = smul.addr %s351, 8
      %s353 = scalar_lea.vmem %s1, %s352
      %s354 = smul.u32 8, %s23
      %s355 = smul.u32 2, %s24
      %s356 = smul.u32 8, %s23
      %s357 = smul.u32 2, %s24
      %p358 = scmp.lt.s32.totalorder %s356, 15
      %s359 = scalar_select %p358, %s356, 15
      %p360 = scmp.lt.s32.totalorder %s357, 1
      %s361 = scalar_select %p360, %s357, 1
      %s362 = smul.addr %s359, 2
      %s363 = sadd.s32 %s361, %s362
      %s364 = smul.addr %s363, 8
      %s365 = scalar_lea.vmem %s7, %s364
      %s366 = smul.u32 8, %s23
      %s367 = smul.u32 2, %s24
      %v368 = vld [vmem:[%s2] sm:$0xff]
      %v369 = vld [vmem:[%s2 + $0x8] sm:$0xff]
      %v370 = vld [vmem:[%s2 + $0x10] sm:$0xff]
      %v371 = vld [vmem:[%s2 + $0x18] sm:$0xff]
      %v372 = vld [vmem:[%s3] sm:$0xff]
      %v373 = vld [vmem:[%s3 + $0x8] sm:$0xff]
      %v374 = vld [vmem:[%s3 + $0x10] sm:$0xff]
      %v375 = vld [vmem:[%s3 + $0x18] sm:$0xff]
      %v376 = vld [vmem:[%s4] sm:$0xff]
      %v377 = vld [vmem:[%s4 + $0x8] sm:$0xff]
      %v378 = vld [vmem:[%s4 + $0x10] sm:$0xff]
      %v379 = vld [vmem:[%s4 + $0x18] sm:$0xff]
      %v380 = vld [vmem:[%s5] sm:$0xff]
      %v381 = vld [vmem:[%s5 + $0x8] sm:$0xff]
      %v382 = vld [vmem:[%s5 + $0x10] sm:$0xff]
      %v383 = vld [vmem:[%s5 + $0x18] sm:$0xff]
      %s384 = sld [smem:[#allocation2]]
      %v385 = vld [vmem:[%s341] sm:$0xff]
      %v386 = vld [vmem:[%s341 + $0x8] sm:$0xff]
      %v387 = vld [vmem:[%s341 + $0x10] sm:$0xff]
      %v388 = vld [vmem:[%s341 + $0x18] sm:$0xff]
      %v389 = vld [vmem:[%s341 + $0x20] sm:$0xff]
      %v390 = vld [vmem:[%s341 + $0x28] sm:$0xff]
      %v391 = vld [vmem:[%s341 + $0x30] sm:$0xff]
      %v392 = vld [vmem:[%s341 + $0x38] sm:$0xff]
      %v393 = vld [vmem:[%s341 + $0x40] sm:$0xff]
      %v394 = vld [vmem:[%s341 + $0x48] sm:$0xff]
      %v395 = vld [vmem:[%s341 + $0x50] sm:$0xff]
      %v396 = vld [vmem:[%s341 + $0x58] sm:$0xff]
      %v397 = vld [vmem:[%s341 + $0x60] sm:$0xff]
      %v398 = vld [vmem:[%s341 + $0x68] sm:$0xff]
      %v399 = vld [vmem:[%s341 + $0x70] sm:$0xff]
      %v400 = vld [vmem:[%s341 + $0x78] sm:$0xff]
      %v401 = vld [vmem:[%s353] sm:$0xff]
      %v402 = vld [vmem:[%s353 + $0x8] sm:$0xff]
      %v403 = vld [vmem:[%s353 + $0x10] sm:$0xff]
      %v404 = vld [vmem:[%s353 + $0x18] sm:$0xff]
      %v405 = vld [vmem:[%s353 + $0x20] sm:$0xff]
      %v406 = vld [vmem:[%s353 + $0x28] sm:$0xff]
      %v407 = vld [vmem:[%s353 + $0x30] sm:$0xff]
      %v408 = vld [vmem:[%s353 + $0x38] sm:$0xff]
      %v409 = vld [vmem:[%s353 + $0x40] sm:$0xff]
      %v410 = vld [vmem:[%s353 + $0x48] sm:$0xff]
      %v411 = vld [vmem:[%s353 + $0x50] sm:$0xff]
      %v412 = vld [vmem:[%s353 + $0x58] sm:$0xff]
      %v413 = vld [vmem:[%s353 + $0x60] sm:$0xff]
      %v414 = vld [vmem:[%s353 + $0x68] sm:$0xff]
      %v415 = vld [vmem:[%s353 + $0x70] sm:$0xff]
      %v416 = vld [vmem:[%s353 + $0x78] sm:$0xff]
      %vm417 = vcmask 523264
      %v419 = vsel %vm417, %v372, 0
      %v422 = vsel %vm417, %v373, 0
      %v425 = vsel %vm417, %v374, 0
      %v428 = vsel %vm417, %v375, 0
      %430 = vmatpush.msra.mxu0 0.0
      %431 = vmatpush.msra.mxu0 0.0
      %432 = vmatpush.msra.mxu0 0.0
      %433 = vmatpush.msra.mxu0 0.0
      %434 = vmatpush.msra.mxu0 0.0
      %435 = vmatpush.msra.mxu0 0.0
      %436 = vmatpush.msra.mxu0 0.0
      %437 = vmatpush.msra.mxu0 0.0
      %438 = vmatpush.msra.mxu0 %v415
      %439 = vmatpush.msra.mxu0 %v413
      %440 = vmatpush.msra.mxu0 %v411
      %441 = vmatpush.msra.mxu0 %v409
      %442 = vmatpush.msra.mxu0 %v407
      %443 = vmatpush.msra.mxu0 %v405
      %444 = vmatpush.msra.mxu0 %v403
      %445 = vmatpush.msra.mxu0 %v401
      %446 = vmatmul.f32.gmra.mxu0 %v419
      %v447 = vpop.f32.mrf.mxu0
      %v448 = vadd.f32 0.0, %v447
      %449 = vmatmul.f32.gmra.mxu0 %v422
      %v450 = vpop.f32.mrf.mxu0
      %v451 = vadd.f32 0.0, %v450
      %452 = vmatmul.f32.gmra.mxu0 %v425
      %v453 = vpop.f32.mrf.mxu0
      %v454 = vadd.f32 0.0, %v453
      %455 = vmatmul.f32.gmra.mxu0 %v428
      %v456 = vpop.f32.mrf.mxu0
      %v457 = vadd.f32 0.0, %v456
      %458 = vdwg.mxu0
      %459 = vmatpush.msra.mxu0 0.0
      %460 = vmatpush.msra.mxu0 0.0
      %461 = vmatpush.msra.mxu0 0.0
      %462 = vmatpush.msra.mxu0 0.0
      %463 = vmatpush.msra.mxu0 0.0
      %464 = vmatpush.msra.mxu0 0.0
      %465 = vmatpush.msra.mxu0 0.0
      %466 = vmatpush.msra.mxu0 0.0
      %467 = vmatpush.msra.mxu0 %v416
      %468 = vmatpush.msra.mxu0 %v414
      %469 = vmatpush.msra.mxu0 %v412
      %470 = vmatpush.msra.mxu0 %v410
      %471 = vmatpush.msra.mxu0 %v408
      %472 = vmatpush.msra.mxu0 %v406
      %473 = vmatpush.msra.mxu0 %v404
      %474 = vmatpush.msra.mxu0 %v402
      %475 = vmatmul.f32.gmra.mxu0 %v419
      %v476 = vpop.f32.mrf.mxu0
      %v477 = vadd.f32 0.0, %v476
      %478 = vmatmul.f32.gmra.mxu0 %v422
      %v479 = vpop.f32.mrf.mxu0
      %v480 = vadd.f32 0.0, %v479
      %481 = vmatmul.f32.gmra.mxu0 %v425
      %v482 = vpop.f32.mrf.mxu0
      %v483 = vadd.f32 0.0, %v482
      %484 = vmatmul.f32.gmra.mxu0 %v428
      %v485 = vpop.f32.mrf.mxu0
      %v486 = vadd.f32 0.0, %v485
      %487 = vdwg.mxu0
      %v489 = vsel %vm417, %v368, 0
      %v492 = vsel %vm417, %v369, 0
      %v495 = vsel %vm417, %v370, 0
      %v498 = vsel %vm417, %v371, 0
      %500 = vmatpush.msra.mxu0 0.0
      %501 = vmatpush.msra.mxu0 0.0
      %502 = vmatpush.msra.mxu0 0.0
      %503 = vmatpush.msra.mxu0 0.0
      %504 = vmatpush.msra.mxu0 0.0
      %505 = vmatpush.msra.mxu0 0.0
      %506 = vmatpush.msra.mxu0 0.0
      %507 = vmatpush.msra.mxu0 0.0
      %508 = vmatpush.msra.mxu0 %v399
      %509 = vmatpush.msra.mxu0 %v397
      %510 = vmatpush.msra.mxu0 %v395
      %511 = vmatpush.msra.mxu0 %v393
      %512 = vmatpush.msra.mxu0 %v391
      %513 = vmatpush.msra.mxu0 %v389
      %514 = vmatpush.msra.mxu0 %v387
      %515 = vmatpush.msra.mxu0 %v385
      %516 = vmatmul.f32.gmra.mxu0 %v489
      %v517 = vpop.f32.mrf.mxu0
      %v518 = vadd.f32 %v448, %v517
      %519 = vmatmul.f32.gmra.mxu0 %v492
      %v520 = vpop.f32.mrf.mxu0
      %v521 = vadd.f32 %v451, %v520
      %522 = vmatmul.f32.gmra.mxu0 %v495
      %v523 = vpop.f32.mrf.mxu0
      %v524 = vadd.f32 %v454, %v523
      %525 = vmatmul.f32.gmra.mxu0 %v498
      %v526 = vpop.f32.mrf.mxu0
      %v527 = vadd.f32 %v457, %v526
      %528 = vdwg.mxu0
      %529 = vmatpush.msra.mxu0 0.0
      %530 = vmatpush.msra.mxu0 0.0
      %531 = vmatpush.msra.mxu0 0.0
      %532 = vmatpush.msra.mxu0 0.0
      %533 = vmatpush.msra.mxu0 0.0
      %534 = vmatpush.msra.mxu0 0.0
      %535 = vmatpush.msra.mxu0 0.0
      %536 = vmatpush.msra.mxu0 0.0
      %537 = vmatpush.msra.mxu0 %v400
      %538 = vmatpush.msra.mxu0 %v398
      %539 = vmatpush.msra.mxu0 %v396
      %540 = vmatpush.msra.mxu0 %v394
      %541 = vmatpush.msra.mxu0 %v392
      %542 = vmatpush.msra.mxu0 %v390
      %543 = vmatpush.msra.mxu0 %v388
      %544 = vmatpush.msra.mxu0 %v386
      %545 = vmatmul.f32.gmra.mxu0 %v489
      %v546 = vpop.f32.mrf.mxu0
      %v547 = vadd.f32 %v477, %v546
      %548 = vmatmul.f32.gmra.mxu0 %v492
      %v549 = vpop.f32.mrf.mxu0
      %v550 = vadd.f32 %v480, %v549
      %551 = vmatmul.f32.gmra.mxu0 %v495
      %v552 = vpop.f32.mrf.mxu0
      %v553 = vadd.f32 %v483, %v552
      %554 = vmatmul.f32.gmra.mxu0 %v498
      %v555 = vpop.f32.mrf.mxu0
      %v556 = vadd.f32 %v486, %v555
      %557 = vdwg.mxu0
      %559 = vset.pattern.permute.xlu0 0
      %560 = vperm.xlu0 %559, %v376
      %v561 = vpop.permute.xlu0 %560
      %564 = vset.pattern.permute.xlu0 0
      %565 = vperm.xlu0 %564, %v377
      %v566 = vpop.permute.xlu0 %565
      %569 = vset.pattern.permute.xlu0 0
      %570 = vperm.xlu0 %569, %v378
      %v571 = vpop.permute.xlu0 %570
      %574 = vset.pattern.permute.xlu0 0
      %575 = vperm.xlu0 %574, %v379
      %v576 = vpop.permute.xlu0 %575
      %v578 = vadd.f32 %v518, %v561
      %v579 = vadd.f32 %v547, %v561
      %v580 = vadd.f32 %v521, %v566
      %v581 = vadd.f32 %v550, %v566
      %v582 = vadd.f32 %v524, %v571
      %v583 = vadd.f32 %v553, %v571
      %v584 = vadd.f32 %v527, %v576
      %v585 = vadd.f32 %v556, %v576
      %v586 = vmax.f32 %v578, 0.0
      %v587 = vmax.f32 %v579, 0.0
      %v588 = vmax.f32 %v580, 0.0
      %v589 = vmax.f32 %v581, 0.0
      %v590 = vmax.f32 %v582, 0.0
      %v591 = vmax.f32 %v583, 0.0
      %v592 = vmax.f32 %v584, 0.0
      %v593 = vmax.f32 %v585, 0.0
      %595 = vset.pattern.permute.xlu0 0
      %596 = vperm.xlu0 %595, %v380
      %v597 = vpop.permute.xlu0 %596
      %600 = vset.pattern.permute.xlu0 0
      %601 = vperm.xlu0 %600, %v381
      %v602 = vpop.permute.xlu0 %601
      %605 = vset.pattern.permute.xlu0 0
      %606 = vperm.xlu0 %605, %v382
      %v607 = vpop.permute.xlu0 %606
      %610 = vset.pattern.permute.xlu0 0
      %611 = vperm.xlu0 %610, %v383
      %v612 = vpop.permute.xlu0 %611
      %v614 = vmul.f32 %v586, %v597
      %v615 = vmul.f32 %v587, %v597
      %v616 = vmul.f32 %v588, %v602
      %v617 = vmul.f32 %v589, %v602
      %v618 = vmul.f32 %v590, %v607
      %v619 = vmul.f32 %v591, %v607
      %v620 = vmul.f32 %v592, %v612
      %v621 = vmul.f32 %v593, %v612
      %v622 = vadd.f32 %v614, %v616
      %v623 = vadd.f32 %v622, %v618
      %v624 = vadd.f32 %v623, %v620
      %v625 = vrot.slane %v624, 4
      %v626 = vadd.f32 %v624, %v625
      %v627 = vrot.slane %v626, 2
      %v628 = vadd.f32 %v626, %v627
      %v629 = vrot.slane %v628, 1
      %v630 = vadd.f32 %v628, %v629
      %v631 = vadd.f32 %v615, %v617
      %v632 = vadd.f32 %v631, %v619
      %v633 = vadd.f32 %v632, %v621
      %v634 = vrot.slane %v633, 4
      %v635 = vadd.f32 %v633, %v634
      %v636 = vrot.slane %v635, 2
      %v637 = vadd.f32 %v635, %v636
      %v638 = vrot.slane %v637, 1
      %v639 = vadd.f32 %v637, %v638
      %v640 = vstv %s384
      %v641 = vadd.f32 %v630, %v640
      %v642 = vadd.f32 %v639, %v640
      %v643 = vxor.u32 %v641, 2147483648
      %v644 = vxor.u32 %v642, 2147483648
      %v645 = vmul.f32 %v643, 1.442695
      %v646 = vpow.pop %v645
      %v647 = vmul.f32 %v644, 1.442695
      %v648 = vpow.pop %v647
      %v649 = vadd.f32 %v646, 1.0
      %v650 = vadd.f32 %v648, 1.0
      %v651 = vrcp.pop %v649
      %v652 = vmul.f32 %v649, %v651
      %v653 = vsub.f32 1.0, %v652
      %v654 = vmul.f32 %v651, %v653
      %v655 = vadd.f32 %v651, %v654
      %vm656 = vweird.f32 %v649
      %vm657 = vweird.f32 %v651
      %vm658 = vmor %vm656, %vm657
      %v659 = vsel %vm658, %v651, %v655
      %v660 = vand.u32 2147483647, %v649
      %vm661 = vcmp.eq.f32.partialorder %v660, 8.507059e+37
      %v662 = vand.u32 %v649, 2147483648
      %v663 = vor.u32 1.1754944e-38, %v662
      %v664 = vsel %vm661, %v663, %v659
      %v665 = vmul.f32 1.0, %v664
      %v666 = vrcp.pop %v650
      %v667 = vmul.f32 %v650, %v666
      %v668 = vsub.f32 1.0, %v667
      %v669 = vmul.f32 %v666, %v668
      %v670 = vadd.f32 %v666, %v669
      %vm671 = vweird.f32 %v650
      %vm672 = vweird.f32 %v666
      %vm673 = vmor %vm671, %vm672
      %v674 = vsel %vm673, %v666, %v670
      %v675 = vand.u32 2147483647, %v650
      %vm676 = vcmp.eq.f32.partialorder %v675, 8.507059e+37
      %v677 = vand.u32 %v650, 2147483648
      %v678 = vor.u32 1.1754944e-38, %v677
      %v679 = vsel %vm676, %v678, %v674
      %v680 = vmul.f32 1.0, %v679
      %v681 = vmul.f32 %v401, %v665
      %v682 = vmul.f32 %v402, %v680
      %v683 = vmul.f32 %v403, %v665
      %v684 = vmul.f32 %v404, %v680
      %v685 = vmul.f32 %v405, %v665
      %v686 = vmul.f32 %v406, %v680
      %v687 = vmul.f32 %v407, %v665
      %v688 = vmul.f32 %v408, %v680
      %v689 = vmul.f32 %v409, %v665
      %v690 = vmul.f32 %v410, %v680
      %v691 = vmul.f32 %v411, %v665
      %v692 = vmul.f32 %v412, %v680
      %v693 = vmul.f32 %v413, %v665
      %v694 = vmul.f32 %v414, %v680
      %v695 = vmul.f32 %v415, %v665
      %v696 = vmul.f32 %v416, %v680
      %697 = vst [vmem:[%s365] sm:$0xff] %v681
      %698 = vst [vmem:[%s365 + $0x8] sm:$0xff] %v682
      %699 = vst [vmem:[%s365 + $0x10] sm:$0xff] %v683
      %700 = vst [vmem:[%s365 + $0x18] sm:$0xff] %v684
      %701 = vst [vmem:[%s365 + $0x20] sm:$0xff] %v685
      %702 = vst [vmem:[%s365 + $0x28] sm:$0xff] %v686
      %703 = vst [vmem:[%s365 + $0x30] sm:$0xff] %v687
      %704 = vst [vmem:[%s365 + $0x38] sm:$0xff] %v688
      %705 = vst [vmem:[%s365 + $0x40] sm:$0xff] %v689
      %706 = vst [vmem:[%s365 + $0x48] sm:$0xff] %v690
      %707 = vst [vmem:[%s365 + $0x50] sm:$0xff] %v691
      %708 = vst [vmem:[%s365 + $0x58] sm:$0xff] %v692
      %709 = vst [vmem:[%s365 + $0x60] sm:$0xff] %v693
      %710 = vst [vmem:[%s365 + $0x68] sm:$0xff] %v694
      %711 = vst [vmem:[%s365 + $0x70] sm:$0xff] %v695
      %712 = vst [vmem:[%s365 + $0x78] sm:$0xff] %v696
      %s713 = smul.u32 8, %s23
      %s714 = smul.u32 2, %s24
      %p715 = scmp.lt.s32.totalorder %s713, 15
      %s716 = scalar_select %p715, %s713, 15
      %p717 = scmp.lt.s32.totalorder %s714, 1
      %s718 = scalar_select %p717, %s714, 1
      %s719 = smul.addr %s716, 2
      %s720 = sadd.s32 %s718, %s719
      %s721 = smul.addr %s720, 8
      %s722 = scalar_lea.vmem %s7, %s721
      // Predicated region
      $region49: #{attention_gate.1} parent=47 // pred_check
        %p723 = pneg %p212
      $region50: #{attention_gate.1} parent=47 // pred_check_branch
        %725 = sbr.rel (%p723) target = $region52
      $region51: #{attention_gate.1} parent=47 // pred_region
        %s726 = smul.u32 8, %s23
        %s727 = smul.u32 2, %s24
      $region52: #{attention_gate.1} parent=47 // pred_fallthru
        _
    $region48: #{attention_gate.1} parent=5 // pred_fallthru
      _
    %p728 = scmp.le.s32.totalorder 2, %s14
    // Predicated region
    $region53: #{attention_gate.1} parent=5 // pred_check
      %p729 = pneg %p728
    $region54: #{attention_gate.1} parent=5 // pred_check_branch
      %731 = sbr.rel (%p729) target = $region56
    $region55: #{attention_gate.1} parent=5 // pred_region
      %s732 = ssub.s32 %s14, 2
      // Predicated region
      $region57: #{attention_gate.1} parent=55 // pred_check
        %p733 = pneg %p218
      $region58: #{attention_gate.1} parent=55 // pred_check_branch
        %735 = sbr.rel (%p733) target = $region60
      $region59: #{attention_gate.1} parent=55 // pred_region
        %s736 = smul.u32 8, %s25
        %s737 = smul.u32 2, %s26
        %p738 = scmp.lt.s32.totalorder %s736, 15
        %s739 = scalar_select %p738, %s736, 15
        %p740 = scmp.lt.s32.totalorder %s737, 1
        %s741 = scalar_select %p740, %s737, 1
        %s742 = smul.addr %s739, 2
        %s743 = sadd.s32 %s741, %s742
        %s744 = smul.addr %s743, 8
        %s745 = scalar_lea.vmem %s7, %s744
      $region60: #{attention_gate.1} parent=55 // pred_fallthru
        _
    $region56: #{attention_gate.1} parent=5 // pred_fallthru
      _
  $region6: #{attention_gate.1} parent=0 // loop_footer
    %s18 = sadd.s32 1, %s14
  $region7: #{attention_gate.1} parent=0 // loop_footer_branch
    %13 = sbr.rel target = $region3
  $region8: #{attention_gate.1} parent=0 // loop_exit
    _

</llo_original>
